<compile_context>
chip_gen: v7x
topology: tpu7x:2x2x1
jax: 0.10.0
libtpu: 0.0.40
codegen_flags: <defaults>
</compile_context>

<pallas_src>
import jax
import jax.numpy as jnp
from jax.experimental import pallas as pl
from jax.experimental.pallas import tpu as pltpu


def _make_ensemble_kernel(num_models: int, num_classes: int):
    """Builds the kernel for a fixed (static) model count and class count."""

    M, K = num_models, num_classes

    def kernel(x_ref, w_ref, b_ref, out_ref):
        # x_ref  : (Cin, TILE)   f32   pixel features (pixels on lanes)
        # w_ref  : (M*K, Cin)    f32   packed per-model 1x1-conv weights (W_m^T stacked)
        # b_ref  : (M*K, 1)      f32   packed per-model biases
        # out_ref: (1, TILE)     i32   majority-vote class per pixel (lane-dense)
        tile = x_ref.shape[1]

        x = x_ref[...]                                                   # (Cin, TILE)

        # One fused matmul for all models: (M*K, Cin) @ (Cin, TILE).
        logits_all = jnp.dot(w_ref[...], x,
                             preferred_element_type=jnp.float32)
        logits_all = logits_all + b_ref[...]                             # (M*K, TILE)

        class_ids = jax.lax.broadcasted_iota(jnp.int32, (K, tile), 0)    # (K, TILE)
        votes = jnp.zeros((K, tile), jnp.int32)

        # M is small and static -> unrolled Python loop over K-row slices.
        for m in range(M):
            logits = logits_all[m * K:(m + 1) * K, :]                    # (K, TILE)
            # argmax over class axis (sublanes), lowest index on ties
            max_val = jnp.max(logits, axis=0, keepdims=True)             # (1, TILE)
            pred = jnp.min(jnp.where(logits == max_val, class_ids, K),
                           axis=0, keepdims=True)                        # (1, TILE)
            # accumulate one-hot vote
            votes = votes + (class_ids == pred).astype(jnp.int32)

        # mode across models: most-voted class, smallest class value on ties
        max_votes = jnp.max(votes, axis=0, keepdims=True)                # (1, TILE)
        mode = jnp.min(jnp.where(votes == max_votes, class_ids, K),
                       axis=0, keepdims=True)                            # (1, TILE)
        out_ref[...] = mode

    return kernel


def ensemble_forward(x_nchw, weights, biases, *, tile=2048):
    """x_nchw : (1, Cin, H, W) float32 (batch must be 1, as in the PyTorch module).
    weights: (M, Cin, K); biases: (M, 1, K).  Returns (H, W) int32 class map."""
    n, cin, h, w = x_nchw.shape
    assert n == 1, "Ensemble.forward squeezes the batch dim -> batch must be 1"
    m, cin_w, k = weights.shape
    assert cin_w == cin

    hw = h * w

    # Pixels-on-lanes layout: (Cin, H*W).  This is a pure reshape of NCHW
    # (no transpose, no extra HBM pass).
    x_flat = x_nchw[0].reshape(cin, hw)

    # Tile sizing: lane-aligned (multiple of 128), capped at `tile`, and pad
    # the pixel axis up to a whole number of tiles so any H*W works.
    tile = min(tile, pl.cdiv(hw, 128) * 128)
    hw_pad = pl.cdiv(hw, tile) * tile
    if hw_pad != hw:
        x_flat = jnp.pad(x_flat, ((0, 0), (0, hw_pad - hw)))

    # Pack all models into one weight matrix: rows m*K..(m+1)*K are W_m^T.
    w_packed = jnp.transpose(weights, (0, 2, 1)).reshape(m * k, cin)     # (M*K, Cin)
    b_packed = biases.reshape(m * k, 1)                                  # (M*K, 1)

    out = pl.pallas_call(
        _make_ensemble_kernel(m, k),
        out_shape=jax.ShapeDtypeStruct((1, hw_pad), jnp.int32),
        grid_spec=pltpu.PrefetchScalarGridSpec(
            num_scalar_prefetch=0,
            grid=(hw_pad // tile,),
            in_specs=[
                pl.BlockSpec((cin, tile), lambda i: (0, i)),     # streamed pixels
                pl.BlockSpec((m * k, cin), lambda i: (0, 0)),    # resident weights
                pl.BlockSpec((m * k, 1), lambda i: (0, 0)),      # resident biases
            ],
            out_specs=pl.BlockSpec((1, tile), lambda i: (0, i)),  # lane-dense store
        ),
        compiler_params=pltpu.CompilerParams(
            dimension_semantics=("parallel",)),
    )(x_flat, w_packed, b_packed)

    return out[0, :hw].reshape(h, w)


def _reference(x_nchw, weights, biases):
    """Pure-JAX reference of the same ensemble forward (mirrors the PyTorch code)."""
    n, cin, h, w = x_nchw.shape
    x_flat = jnp.transpose(x_nchw[0], (1, 2, 0)).reshape(h * w, cin)
    preds = []
    for m in range(weights.shape[0]):
        logits = x_flat @ weights[m] + biases[m, 0]
        preds.append(jnp.argmax(logits, axis=-1))
    stack = jnp.stack(preds, axis=0)                      # (M, H*W)
    k = weights.shape[2]
    votes = (stack[:, :, None] == jnp.arange(k)[None, None, :]).sum(0)
    mode = jnp.argmax(votes, axis=-1)                     # lowest index on ties
    return mode.reshape(h, w).astype(jnp.int32)


if __name__ == "__main__":
    # Shapes consistent with the module: num_classes=15 -> K=16 classes,
    # 3 ensemble members, batch=1 (required by .squeeze()), Cin=4.
    key = jax.random.PRNGKey(0)
    k_x, k_w, k_b, k_x2 = jax.random.split(key, 4)

    M, CIN, K = 3, 4, 16

    # Test 1: 16x16 image, single tile.
    H, W = 16, 16
    x = jax.random.normal(k_x, (1, CIN, H, W), dtype=jnp.float32)
    weights = jax.random.normal(k_w, (M, CIN, K), dtype=jnp.float32)
    biases = 0.1 * jax.random.normal(k_b, (M, 1, K), dtype=jnp.float32)

    out = jax.block_until_ready(ensemble_forward(x, weights, biases))
    ref = jax.block_until_ready(_reference(x, weights, biases))
    assert out.shape == (H, W)
    assert out.dtype == jnp.int32
    assert bool(jnp.all(out == ref)), "Pallas output mismatch vs reference (16x16)"

    # Test 2: non-multiple-of-tile spatial size -> exercises padding and a
    # multi-step grid (tile=512 -> 4 grid steps for 48x40).
    H2, W2 = 48, 40
    x2 = jax.random.normal(k_x2, (1, CIN, H2, W2), dtype=jnp.float32)
    out2 = jax.block_until_ready(ensemble_forward(x2, weights, biases, tile=512))
    ref2 = jax.block_until_ready(_reference(x2, weights, biases))
    assert out2.shape == (H2, W2)
    assert bool(jnp.all(out2 == ref2)), "Pallas output mismatch vs reference (48x40)"

    print("KERNEL_OK")
</pallas_src>

<mosaic_0001>
module attributes {stable_mosaic.version = 11 : i64} {
  func.func @kernel(%arg0: i32, %arg1: memref<4x256xf32, #tpu.memory_space<vmem>>, %arg2: memref<48x4xf32, #tpu.memory_space<vmem>>, %arg3: memref<48x1xf32, #tpu.memory_space<vmem>>, %arg4: memref<1x256xi32, #tpu.memory_space<vmem>>) attributes {dimension_semantics = [#tpu.dimension_semantics<parallel>], iteration_bounds = array<i64: 1>, scalar_prefetch = 0 : i64, scratch_operands = 0 : i64, tpu.core_type = #tpu.core_type<tc>, window_params = [{transform_indices = @transform_0, window_bounds = array<i64: 4, 256>}, {pipeline_mode = #tpu.pipeline_mode<synchronous>, transform_indices = @transform_1, window_bounds = array<i64: 48, 4>}, {pipeline_mode = #tpu.pipeline_mode<synchronous>, transform_indices = @transform_2, window_bounds = array<i64: 48, 1>}, {transform_indices = @transform_3, window_bounds = array<i64: 1, 256>}]} {
    %c0 = arith.constant 0 : index
    %c0_0 = arith.constant 0 : index
    %0 = vector.load %arg1[%c0, %c0_0] : memref<4x256xf32, #tpu.memory_space<vmem>>, vector<4x256xf32>
    %c0_1 = arith.constant 0 : index
    %c0_2 = arith.constant 0 : index
    %1 = vector.load %arg2[%c0_1, %c0_2] : memref<48x4xf32, #tpu.memory_space<vmem>>, vector<48x4xf32>
    %cst = arith.constant dense<0.000000e+00> : vector<48x256xf32>
    %2 = tpu.matmul %1, %0, %cst {dimension_numbers = #tpu.dot_dimension_numbers<[1], [0], [0], [1], [0, 0, 1, 1], [], []>} : vector<48x4xf32>, vector<4x256xf32>, vector<48x256xf32> -> vector<48x256xf32>
    %c0_3 = arith.constant 0 : index
    %c0_4 = arith.constant 0 : index
    %3 = vector.load %arg3[%c0_3, %c0_4] : memref<48x1xf32, #tpu.memory_space<vmem>>, vector<48x1xf32>
    %4 = vector.broadcast %3 : vector<48x1xf32> to vector<48x256xf32>
    %5 = arith.addf %2, %4 : vector<48x256xf32>
    %6 = tpu.iota {dimensions = array<i32: 0>} : vector<16x256xi32>
    %c0_i32 = arith.constant 0 : i32
    %7 = vector.broadcast %c0_i32 : i32 to vector<16x256xi32>
    %8 = vector.extract_strided_slice %5 {offsets = [0, 0], sizes = [16, 256], strides = [1, 1]} : vector<48x256xf32> to vector<16x256xf32>
    %cst_5 = arith.constant dense<0xFF800000> : vector<256xf32>
    %9 = vector.multi_reduction <maximumf>, %8, %cst_5 [0] : vector<16x256xf32> to vector<256xf32>
    %10 = vector.shape_cast %9 : vector<256xf32> to vector<1x256xf32>
    %11 = vector.broadcast %10 : vector<1x256xf32> to vector<16x256xf32>
    %12 = arith.cmpf oeq, %8, %11 : vector<16x256xf32>
    %c16_i32 = arith.constant 16 : i32
    %13 = vector.broadcast %c16_i32 : i32 to vector<16x256xi32>
    %14 = arith.select %12, %6, %13 : vector<16x256xi1>, vector<16x256xi32>
    %cst_6 = arith.constant dense<2147483647> : vector<256xi32>
    %15 = vector.multi_reduction <minsi>, %14, %cst_6 [0] : vector<16x256xi32> to vector<256xi32>
    %16 = vector.shape_cast %15 : vector<256xi32> to vector<1x256xi32>
    %17 = vector.broadcast %16 : vector<1x256xi32> to vector<16x256xi32>
    %18 = arith.cmpi eq, %6, %17 : vector<16x256xi32>
    %19 = arith.extui %18 : vector<16x256xi1> to vector<16x256xi32>
    %20 = arith.addi %7, %19 : vector<16x256xi32>
    %21 = vector.extract_strided_slice %5 {offsets = [16, 0], sizes = [16, 256], strides = [1, 1]} : vector<48x256xf32> to vector<16x256xf32>
    %cst_7 = arith.constant dense<0xFF800000> : vector<256xf32>
    %22 = vector.multi_reduction <maximumf>, %21, %cst_7 [0] : vector<16x256xf32> to vector<256xf32>
    %23 = vector.shape_cast %22 : vector<256xf32> to vector<1x256xf32>
    %24 = vector.broadcast %23 : vector<1x256xf32> to vector<16x256xf32>
    %25 = arith.cmpf oeq, %21, %24 : vector<16x256xf32>
    %c16_i32_8 = arith.constant 16 : i32
    %26 = vector.broadcast %c16_i32_8 : i32 to vector<16x256xi32>
    %27 = arith.select %25, %6, %26 : vector<16x256xi1>, vector<16x256xi32>
    %cst_9 = arith.constant dense<2147483647> : vector<256xi32>
    %28 = vector.multi_reduction <minsi>, %27, %cst_9 [0] : vector<16x256xi32> to vector<256xi32>
    %29 = vector.shape_cast %28 : vector<256xi32> to vector<1x256xi32>
    %30 = vector.broadcast %29 : vector<1x256xi32> to vector<16x256xi32>
    %31 = arith.cmpi eq, %6, %30 : vector<16x256xi32>
    %32 = arith.extui %31 : vector<16x256xi1> to vector<16x256xi32>
    %33 = arith.addi %20, %32 : vector<16x256xi32>
    %34 = vector.extract_strided_slice %5 {offsets = [32, 0], sizes = [16, 256], strides = [1, 1]} : vector<48x256xf32> to vector<16x256xf32>
    %cst_10 = arith.constant dense<0xFF800000> : vector<256xf32>
    %35 = vector.multi_reduction <maximumf>, %34, %cst_10 [0] : vector<16x256xf32> to vector<256xf32>
    %36 = vector.shape_cast %35 : vector<256xf32> to vector<1x256xf32>
    %37 = vector.broadcast %36 : vector<1x256xf32> to vector<16x256xf32>
    %38 = arith.cmpf oeq, %34, %37 : vector<16x256xf32>
    %c16_i32_11 = arith.constant 16 : i32
    %39 = vector.broadcast %c16_i32_11 : i32 to vector<16x256xi32>
    %40 = arith.select %38, %6, %39 : vector<16x256xi1>, vector<16x256xi32>
    %cst_12 = arith.constant dense<2147483647> : vector<256xi32>
    %41 = vector.multi_reduction <minsi>, %40, %cst_12 [0] : vector<16x256xi32> to vector<256xi32>
    %42 = vector.shape_cast %41 : vector<256xi32> to vector<1x256xi32>
    %43 = vector.broadcast %42 : vector<1x256xi32> to vector<16x256xi32>
    %44 = arith.cmpi eq, %6, %43 : vector<16x256xi32>
    %45 = arith.extui %44 : vector<16x256xi1> to vector<16x256xi32>
    %46 = arith.addi %33, %45 : vector<16x256xi32>
    %cst_13 = arith.constant dense<-2147483648> : vector<256xi32>
    %47 = vector.multi_reduction <maxsi>, %46, %cst_13 [0] : vector<16x256xi32> to vector<256xi32>
    %48 = vector.shape_cast %47 : vector<256xi32> to vector<1x256xi32>
    %49 = vector.broadcast %48 : vector<1x256xi32> to vector<16x256xi32>
    %50 = arith.cmpi eq, %46, %49 : vector<16x256xi32>
    %c16_i32_14 = arith.constant 16 : i32
    %51 = vector.broadcast %c16_i32_14 : i32 to vector<16x256xi32>
    %52 = arith.select %50, %6, %51 : vector<16x256xi1>, vector<16x256xi32>
    %cst_15 = arith.constant dense<2147483647> : vector<256xi32>
    %53 = vector.multi_reduction <minsi>, %52, %cst_15 [0] : vector<16x256xi32> to vector<256xi32>
    %54 = vector.shape_cast %53 : vector<256xi32> to vector<1x256xi32>
    %c0_16 = arith.constant 0 : index
    %c0_17 = arith.constant 0 : index
    %55 = vector.load %arg4[%c0_16, %c0_17] : memref<1x256xi32, #tpu.memory_space<vmem>>, vector<1x256xi32>
    tpu.vector_store %arg4[%c0_16, %c0_17], %54 {strides = array<i32>} : memref<1x256xi32, #tpu.memory_space<vmem>>, vector<1x256xi32>,
    return
  }
  func.func @transform_0(%arg0: i32) -> (i32, i32) {
    %c0_i32 = arith.constant 0 : i32
    %c0_i32_0 = arith.constant 0 : i32
    return %c0_i32, %arg0 : i32, i32
  }
  func.func @transform_1(%arg0: i32) -> (i32, i32) {
    %c0_i32 = arith.constant 0 : i32
    %c0_i32_0 = arith.constant 0 : i32
    %c0_i32_1 = arith.constant 0 : i32
    return %c0_i32, %c0_i32_0 : i32, i32
  }
  func.func @transform_2(%arg0: i32) -> (i32, i32) {
    %c0_i32 = arith.constant 0 : i32
    %c0_i32_0 = arith.constant 0 : i32
    %c0_i32_1 = arith.constant 0 : i32
    return %c0_i32, %c0_i32_0 : i32, i32
  }
  func.func @transform_3(%arg0: i32) -> (i32, i32) {
    %c0_i32 = arith.constant 0 : i32
    %c0_i32_0 = arith.constant 0 : i32
    return %c0_i32, %arg0 : i32, i32
  }
}

</mosaic_0001>

<llo_original>
// kernel: tpu_custom_call.1
$region0: #{tpu_custom_call.1}
  #allocation0 [shape = 'u32[]', space=smem, size = 0x4, offset = 0x4, fixed_abs, tag = 'smem constant byte address 0x4 - core index']
  #allocation1 [shape = 'u32[144,128]{1,0:T(1,128)}', space=vmem, size = 0x12000, scoped, tag = 'internal scratch']
  %s0 = inlined_call_operand.vmem [shape: f32[4,256], index: 0, kind: input, shape index: {}]
  %s1 = inlined_call_operand.vmem [shape: f32[48,4], index: 1, kind: input, shape index: {}]
  %s2 = inlined_call_operand.vmem [shape: f32[48,1], index: 2, kind: input, shape index: {}]
  %s3 = inlined_call_operand.hbm [shape: s32[1,256], index: 3, kind: output, shape index: {}]
  %s4 = sld [smem:[#allocation0]]
  $region22: #{tpu_custom_call.1} parent=0
    _
  %s6 = ssub.s32 1, %s4
  %s7 = scalar_select 0, %s6, %s4
  $region1: #{tpu_custom_call.1} parent=0
    #allocation2 [shape = 'u8[1024]{0}', space=vmem, size = 0x400, scoped, tag = 'output window, operand 0, single buffered']
    #allocation3 [shape = 's32[1]{0}', space=sflag, size = 0x4, scoped, tag = 'scoped memory for tpu_custom_call.1']
    %8 = vsyncpa [#allocation3], 0
    // Predicated region
    $region2: #{tpu_custom_call.1} parent=1 // pred_check
      _
    $region3: #{tpu_custom_call.1} parent=1 // pred_check_branch
      %10 = sbr.rel (0) target = $region5
    $region4: #{tpu_custom_call.1} parent=1 // pred_region
      _
    $region5: #{tpu_custom_call.1} parent=1 // pred_fallthru
      _
    // Predicated region
    $region6: #{tpu_custom_call.1} parent=1 // pred_check
      _
    $region7: #{tpu_custom_call.1} parent=1 // pred_check_branch
      %12 = sbr.rel (0) target = $region9
    $region8: #{tpu_custom_call.1} parent=1 // pred_region
      _
    $region9: #{tpu_custom_call.1} parent=1 // pred_fallthru
      _
    // Predicated region
    $region10: #{tpu_custom_call.1} parent=1 // pred_check
      _
    $region11: #{tpu_custom_call.1} parent=1 // pred_check_branch
      %14 = sbr.rel (0) target = $region13
    $region12: #{tpu_custom_call.1} parent=1 // pred_region
      _
    $region13: #{tpu_custom_call.1} parent=1 // pred_fallthru
      _
    %v15 = vld [vmem:[%s0] sm:$0xff]
    %v16 = vld [vmem:[%s1] sm:$0xff]
    %v17 = vld [vmem:[%s1 + $0x8] sm:$0xff]
    %v18 = vld [vmem:[%s1 + $0x10] sm:$0xff]
    %v19 = vld [vmem:[%s1 + $0x18] sm:$0xff]
    %v20 = vld [vmem:[%s1 + $0x20] sm:$0xff]
    %v21 = vld [vmem:[%s1 + $0x28] sm:$0xff]
    %v22 = vld [vmem:[%s2] sm:$0xff]
    %v23 = vld [vmem:[%s2 + $0x8] sm:$0xff]
    %v24 = vld [vmem:[%s2 + $0x10] sm:$0xff]
    %v25 = vld [vmem:[%s2 + $0x18] sm:$0xff]
    %v26 = vld [vmem:[%s2 + $0x20] sm:$0xff]
    %v27 = vld [vmem:[%s2 + $0x28] sm:$0xff]
    %29 = vset.pattern.permute.xlu0 0
    %30 = vperm.xlu0 %29, %v22
    %v31 = vpop.permute.xlu0 %30
    %34 = vset.pattern.permute.xlu0 0
    %35 = vperm.xlu0 %34, %v23
    %v36 = vpop.permute.xlu0 %35
    %39 = vset.pattern.permute.xlu0 0
    %40 = vperm.xlu0 %39, %v24
    %v41 = vpop.permute.xlu0 %40
    %44 = vset.pattern.permute.xlu0 0
    %45 = vperm.xlu0 %44, %v25
    %v46 = vpop.permute.xlu0 %45
    %49 = vset.pattern.permute.xlu0 0
    %50 = vperm.xlu0 %49, %v26
    %v51 = vpop.permute.xlu0 %50
    %54 = vset.pattern.permute.xlu0 0
    %55 = vperm.xlu0 %54, %v27
    %v56 = vpop.permute.xlu0 %55
    %v59 = vcombine.high %v15, %v15
    %vm60 = vcmask 31744
    %v62 = vsel %vm60, %v16, 0
    %v65 = vsel %vm60, %v17, 0
    %v68 = vsel %vm60, %v18, 0
    %v71 = vsel %vm60, %v19, 0
    %v74 = vsel %vm60, %v20, 0
    %v77 = vsel %vm60, %v21, 0
    %vm79 = vcmask 1043456
    %v80 = vsel %vm79, %v15, 0
    %v82 = vsel %vm79, %v59, 0
    %84 = vmatprep.subr.mxu0 %v82
    %85 = vmatpush1.msra.mxu0 %v80
    %86 = vmatprep.subr.mxu0 0.0
    %87 = vmatpush1.msra.mxu0 0.0
    %88 = vmatprep.subr.mxu0 0.0
    %89 = vmatpush1.msra.mxu0 0.0
    %90 = vmatprep.subr.mxu0 0.0
    %91 = vmatpush1.msra.mxu0 0.0
    %92 = vmatprep.subr.mxu0 0.0
    %93 = vmatpush1.msra.mxu0 0.0
    %94 = vmatprep.subr.mxu0 0.0
    %95 = vmatpush1.msra.mxu0 0.0
    %96 = vmatprep.subr.mxu0 0.0
    %97 = vmatpush1.msra.mxu0 0.0
    %98 = vmatprep.subr.mxu0 0.0
    %99 = vmatpush1.msra.mxu0 0.0
    %100 = vmatprep.subr.mxu0 0.0
    %101 = vmatpush1.msra.mxu0 0.0
    %102 = vmatprep.subr.mxu0 0.0
    %103 = vmatpush1.msra.mxu0 0.0
    %104 = vmatprep.subr.mxu0 0.0
    %105 = vmatpush1.msra.mxu0 0.0
    %106 = vmatprep.subr.mxu0 0.0
    %107 = vmatpush1.msra.mxu0 0.0
    %108 = vmatprep.subr.mxu0 0.0
    %109 = vmatpush1.msra.mxu0 0.0
    %110 = vmatprep.subr.mxu0 0.0
    %111 = vmatpush1.msra.mxu0 0.0
    %112 = vmatprep.subr.mxu0 0.0
    %113 = vmatpush1.msra.mxu0 0.0
    %114 = vmatprep.subr.mxu0 0.0
    %115 = vmatpush1.msra.mxu0 0.0
    %116 = vmatprep.subr.mxu0 0.0
    %117 = vmatpush1.msra.mxu0 0.0
    %118 = vmatprep.subr.mxu0 0.0
    %119 = vmatpush1.msra.mxu0 0.0
    %120 = vmatprep.subr.mxu0 0.0
    %121 = vmatpush1.msra.mxu0 0.0
    %122 = vmatprep.subr.mxu0 0.0
    %123 = vmatpush1.msra.mxu0 0.0
    %124 = vmatprep.subr.mxu0 0.0
    %125 = vmatpush1.msra.mxu0 0.0
    %126 = vmatprep.subr.mxu0 0.0
    %127 = vmatpush1.msra.mxu0 0.0
    %128 = vmatprep.subr.mxu0 0.0
    %129 = vmatpush1.msra.mxu0 0.0
    %130 = vmatprep.subr.mxu0 0.0
    %131 = vmatpush1.msra.mxu0 0.0
    %132 = vmatprep.subr.mxu0 0.0
    %133 = vmatpush1.msra.mxu0 0.0
    %134 = vmatprep.subr.mxu0 0.0
    %135 = vmatpush1.msra.mxu0 0.0
    %136 = vmatprep.subr.mxu0 0.0
    %137 = vmatpush1.msra.mxu0 0.0
    %138 = vmatprep.subr.mxu0 0.0
    %139 = vmatpush1.msra.mxu0 0.0
    %140 = vmatprep.subr.mxu0 0.0
    %141 = vmatpush1.msra.mxu0 0.0
    %142 = vmatprep.subr.mxu0 0.0
    %143 = vmatpush1.msra.mxu0 0.0
    %144 = vmatprep.subr.mxu0 0.0
    %145 = vmatpush1.msra.mxu0 0.0
    %146 = vmatprep.subr.mxu0 0.0
    %147 = vmatpush1.msra.mxu0 0.0
    %148 = vmatprep.mubr.f32.mxu0 0.0
    %149 = vmatmul.mubr.f32.gmra.mrb[0].mxu0 %v62
    %v150 = vpop.f32.mrb[0].mxu0
    %v151 = vadd.f32 %v31, %v150
    %v152 = vpop.f32.mrb[0].mxu0
    %v153 = vadd.f32 %v31, %v152
    %154 = vmatprep.mubr.f32.mxu0 0.0
    %155 = vmatmul.mubr.f32.gmra.mrb[0].mxu0 %v65
    %v156 = vpop.f32.mrb[0].mxu0
    %v157 = vadd.f32 %v36, %v156
    %v158 = vpop.f32.mrb[0].mxu0
    %v159 = vadd.f32 %v36, %v158
    %160 = vmatprep.mubr.f32.mxu0 0.0
    %161 = vmatmul.mubr.f32.gmra.mrb[0].mxu0 %v68
    %v162 = vpop.f32.mrb[0].mxu0
    %v163 = vadd.f32 %v41, %v162
    %v164 = vpop.f32.mrb[0].mxu0
    %v165 = vadd.f32 %v41, %v164
    %166 = vmatprep.mubr.f32.mxu0 0.0
    %167 = vmatmul.mubr.f32.gmra.mrb[0].mxu0 %v71
    %v168 = vpop.f32.mrb[0].mxu0
    %v169 = vadd.f32 %v46, %v168
    %v170 = vpop.f32.mrb[0].mxu0
    %v171 = vadd.f32 %v46, %v170
    %172 = vmatprep.mubr.f32.mxu0 0.0
    %173 = vmatmul.mubr.f32.gmra.mrb[0].mxu0 %v74
    %v174 = vpop.f32.mrb[0].mxu0
    %v175 = vadd.f32 %v51, %v174
    %v176 = vpop.f32.mrb[0].mxu0
    %v177 = vadd.f32 %v51, %v176
    %178 = vmatprep.mubr.f32.mxu0 0.0
    %179 = vmatmul.mubr.f32.gmra.mrb[0].mxu0 %v77
    %v180 = vpop.f32.mrb[0].mxu0
    %v181 = vadd.f32 %v56, %v180
    %v182 = vpop.f32.mrb[0].mxu0
    %v183 = vadd.f32 %v56, %v182
    %184 = vdwg.mxu0
    %v185 = vlaneseq
    %v186 = vshrl.u32 %v185, 7
    %v187 = vadd.s32 %v186, 8
    %v188 = vmax.f32 %v151, %v157
    %v189 = vrot.slane %v188, 4
    %v190 = vmax.f32 %v188, %v189
    %v191 = vrot.slane %v190, 2
    %v192 = vmax.f32 %v190, %v191
    %v193 = vrot.slane %v192, 1
    %v194 = vmax.f32 %v192, %v193
    %v195 = vmax.f32 %v153, %v159
    %v196 = vrot.slane %v195, 4
    %v197 = vmax.f32 %v195, %v196
    %v198 = vrot.slane %v197, 2
    %v199 = vmax.f32 %v197, %v198
    %v200 = vrot.slane %v199, 1
    %v201 = vmax.f32 %v199, %v200
    %vm202 = vcmp.eq.f32.partialorder %v151, %v194
    %vm203 = vcmp.eq.f32.partialorder %v153, %v201
    %vm204 = vcmp.eq.f32.partialorder %v157, %v194
    %vm205 = vcmp.eq.f32.partialorder %v159, %v201
    %v206 = vsel %vm202, %v186, 16
    %v207 = vsel %vm203, %v186, 16
    %v208 = vsel %vm204, %v187, 16
    %v209 = vsel %vm205, %v187, 16
    %vm210 = vcmp.lt.s32.totalorder %v206, %v208
    %v211 = vsel %vm210, %v206, %v208
    %v212 = vrot.slane %v211, 4
    %vm213 = vcmp.lt.s32.totalorder %v211, %v212
    %v214 = vsel %vm213, %v211, %v212
    %v215 = vrot.slane %v214, 2
    %vm216 = vcmp.lt.s32.totalorder %v214, %v215
    %v217 = vsel %vm216, %v214, %v215
    %v218 = vrot.slane %v217, 1
    %vm219 = vcmp.lt.s32.totalorder %v217, %v218
    %v220 = vsel %vm219, %v217, %v218
    %vm221 = vcmp.lt.s32.totalorder %v207, %v209
    %v222 = vsel %vm221, %v207, %v209
    %v223 = vrot.slane %v222, 4
    %vm224 = vcmp.lt.s32.totalorder %v222, %v223
    %v225 = vsel %vm224, %v222, %v223
    %v226 = vrot.slane %v225, 2
    %vm227 = vcmp.lt.s32.totalorder %v225, %v226
    %v228 = vsel %vm227, %v225, %v226
    %v229 = vrot.slane %v228, 1
    %vm230 = vcmp.lt.s32.totalorder %v228, %v229
    %v231 = vsel %vm230, %v228, %v229
    %vm232 = vcmp.eq.s32.totalorder %v186, %v220
    %vm233 = vcmp.eq.s32.totalorder %v186, %v231
    %vm234 = vcmp.eq.s32.totalorder %v187, %v220
    %vm235 = vcmp.eq.s32.totalorder %v187, %v231
    %v236 = vsel %vm232, 1, 0
    %v237 = vsel %vm233, 1, 0
    %v238 = vsel %vm234, 1, 0
    %v239 = vsel %vm235, 1, 0
    %v240 = vmax.f32 %v163, %v169
    %v241 = vrot.slane %v240, 4
    %v242 = vmax.f32 %v240, %v241
    %v243 = vrot.slane %v242, 2
    %v244 = vmax.f32 %v242, %v243
    %v245 = vrot.slane %v244, 1
    %v246 = vmax.f32 %v244, %v245
    %v247 = vmax.f32 %v165, %v171
    %v248 = vrot.slane %v247, 4
    %v249 = vmax.f32 %v247, %v248
    %v250 = vrot.slane %v249, 2
    %v251 = vmax.f32 %v249, %v250
    %v252 = vrot.slane %v251, 1
    %v253 = vmax.f32 %v251, %v252
    %vm254 = vcmp.eq.f32.partialorder %v163, %v246
    %vm255 = vcmp.eq.f32.partialorder %v165, %v253
    %vm256 = vcmp.eq.f32.partialorder %v169, %v246
    %vm257 = vcmp.eq.f32.partialorder %v171, %v253
    %v258 = vsel %vm254, %v186, 16
    %v259 = vsel %vm255, %v186, 16
    %v260 = vsel %vm256, %v187, 16
    %v261 = vsel %vm257, %v187, 16
    %vm262 = vcmp.lt.s32.totalorder %v258, %v260
    %v263 = vsel %vm262, %v258, %v260
    %v264 = vrot.slane %v263, 4
    %vm265 = vcmp.lt.s32.totalorder %v263, %v264
    %v266 = vsel %vm265, %v263, %v264
    %v267 = vrot.slane %v266, 2
    %vm268 = vcmp.lt.s32.totalorder %v266, %v267
    %v269 = vsel %vm268, %v266, %v267
    %v270 = vrot.slane %v269, 1
    %vm271 = vcmp.lt.s32.totalorder %v269, %v270
    %v272 = vsel %vm271, %v269, %v270
    %vm273 = vcmp.lt.s32.totalorder %v259, %v261
    %v274 = vsel %vm273, %v259, %v261
    %v275 = vrot.slane %v274, 4
    %vm276 = vcmp.lt.s32.totalorder %v274, %v275
    %v277 = vsel %vm276, %v274, %v275
    %v278 = vrot.slane %v277, 2
    %vm279 = vcmp.lt.s32.totalorder %v277, %v278
    %v280 = vsel %vm279, %v277, %v278
    %v281 = vrot.slane %v280, 1
    %vm282 = vcmp.lt.s32.totalorder %v280, %v281
    %v283 = vsel %vm282, %v280, %v281
    %vm284 = vcmp.eq.s32.totalorder %v186, %v272
    %vm285 = vcmp.eq.s32.totalorder %v186, %v283
    %vm286 = vcmp.eq.s32.totalorder %v187, %v272
    %vm287 = vcmp.eq.s32.totalorder %v187, %v283
    %v288 = vsel %vm284, 1, 0
    %v289 = vsel %vm285, 1, 0
    %v290 = vsel %vm286, 1, 0
    %v291 = vsel %vm287, 1, 0
    %v292 = vadd.s32 %v236, %v288
    %v293 = vadd.s32 %v237, %v289
    %v294 = vadd.s32 %v238, %v290
    %v295 = vadd.s32 %v239, %v291
    %v296 = vmax.f32 %v175, %v181
    %v297 = vrot.slane %v296, 4
    %v298 = vmax.f32 %v296, %v297
    %v299 = vrot.slane %v298, 2
    %v300 = vmax.f32 %v298, %v299
    %v301 = vrot.slane %v300, 1
    %v302 = vmax.f32 %v300, %v301
    %v303 = vmax.f32 %v177, %v183
    %v304 = vrot.slane %v303, 4
    %v305 = vmax.f32 %v303, %v304
    %v306 = vrot.slane %v305, 2
    %v307 = vmax.f32 %v305, %v306
    %v308 = vrot.slane %v307, 1
    %v309 = vmax.f32 %v307, %v308
    %vm310 = vcmp.eq.f32.partialorder %v175, %v302
    %vm311 = vcmp.eq.f32.partialorder %v177, %v309
    %vm312 = vcmp.eq.f32.partialorder %v181, %v302
    %vm313 = vcmp.eq.f32.partialorder %v183, %v309
    %v314 = vsel %vm310, %v186, 16
    %v315 = vsel %vm311, %v186, 16
    %v316 = vsel %vm312, %v187, 16
    %v317 = vsel %vm313, %v187, 16
    %vm318 = vcmp.lt.s32.totalorder %v314, %v316
    %v319 = vsel %vm318, %v314, %v316
    %v320 = vrot.slane %v319, 4
    %vm321 = vcmp.lt.s32.totalorder %v319, %v320
    %v322 = vsel %vm321, %v319, %v320
    %v323 = vrot.slane %v322, 2
    %vm324 = vcmp.lt.s32.totalorder %v322, %v323
    %v325 = vsel %vm324, %v322, %v323
    %v326 = vrot.slane %v325, 1
    %vm327 = vcmp.lt.s32.totalorder %v325, %v326
    %v328 = vsel %vm327, %v325, %v326
    %vm329 = vcmp.lt.s32.totalorder %v315, %v317
    %v330 = vsel %vm329, %v315, %v317
    %v331 = vrot.slane %v330, 4
    %vm332 = vcmp.lt.s32.totalorder %v330, %v331
    %v333 = vsel %vm332, %v330, %v331
    %v334 = vrot.slane %v333, 2
    %vm335 = vcmp.lt.s32.totalorder %v333, %v334
    %v336 = vsel %vm335, %v333, %v334
    %v337 = vrot.slane %v336, 1
    %vm338 = vcmp.lt.s32.totalorder %v336, %v337
    %v339 = vsel %vm338, %v336, %v337
    %vm340 = vcmp.eq.s32.totalorder %v186, %v328
    %vm341 = vcmp.eq.s32.totalorder %v186, %v339
    %vm342 = vcmp.eq.s32.totalorder %v187, %v328
    %vm343 = vcmp.eq.s32.totalorder %v187, %v339
    %v344 = vsel %vm340, 1, 0
    %v345 = vsel %vm341, 1, 0
    %v346 = vsel %vm342, 1, 0
    %v347 = vsel %vm343, 1, 0
    %v348 = vadd.s32 %v292, %v344
    %v349 = vadd.s32 %v293, %v345
    %v350 = vadd.s32 %v294, %v346
    %v351 = vadd.s32 %v295, %v347
    %vm352 = vcmp.gt.s32.totalorder %v348, %v350
    %v353 = vsel %vm352, %v348, %v350
    %v354 = vrot.slane %v353, 4
    %vm355 = vcmp.gt.s32.totalorder %v353, %v354
    %v356 = vsel %vm355, %v353, %v354
    %v357 = vrot.slane %v356, 2
    %vm358 = vcmp.gt.s32.totalorder %v356, %v357
    %v359 = vsel %vm358, %v356, %v357
    %v360 = vrot.slane %v359, 1
    %vm361 = vcmp.gt.s32.totalorder %v359, %v360
    %v362 = vsel %vm361, %v359, %v360
    %vm363 = vcmp.gt.s32.totalorder %v349, %v351
    %v364 = vsel %vm363, %v349, %v351
    %v365 = vrot.slane %v364, 4
    %vm366 = vcmp.gt.s32.totalorder %v364, %v365
    %v367 = vsel %vm366, %v364, %v365
    %v368 = vrot.slane %v367, 2
    %vm369 = vcmp.gt.s32.totalorder %v367, %v368
    %v370 = vsel %vm369, %v367, %v368
    %v371 = vrot.slane %v370, 1
    %vm372 = vcmp.gt.s32.totalorder %v370, %v371
    %v373 = vsel %vm372, %v370, %v371
    %vm374 = vcmp.eq.s32.totalorder %v348, %v362
    %vm375 = vcmp.eq.s32.totalorder %v349, %v373
    %vm376 = vcmp.eq.s32.totalorder %v350, %v362
    %vm377 = vcmp.eq.s32.totalorder %v351, %v373
    %v378 = vsel %vm374, %v186, 16
    %v379 = vsel %vm375, %v186, 16
    %v380 = vsel %vm376, %v187, 16
    %v381 = vsel %vm377, %v187, 16
    %vm382 = vcmp.lt.s32.totalorder %v378, %v380
    %v383 = vsel %vm382, %v378, %v380
    %v384 = vrot.slane %v383, 4
    %vm385 = vcmp.lt.s32.totalorder %v383, %v384
    %v386 = vsel %vm385, %v383, %v384
    %v387 = vrot.slane %v386, 2
    %vm388 = vcmp.lt.s32.totalorder %v386, %v387
    %v389 = vsel %vm388, %v386, %v387
    %v390 = vrot.slane %v389, 1
    %vm391 = vcmp.lt.s32.totalorder %v389, %v390
    %v392 = vsel %vm391, %v389, %v390
    %vm393 = vcmp.lt.s32.totalorder %v379, %v381
    %v394 = vsel %vm393, %v379, %v381
    %v395 = vrot.slane %v394, 4
    %vm396 = vcmp.lt.s32.totalorder %v394, %v395
    %v397 = vsel %vm396, %v394, %v395
    %v398 = vrot.slane %v397, 2
    %vm399 = vcmp.lt.s32.totalorder %v397, %v398
    %v400 = vsel %vm399, %v397, %v398
    %v401 = vrot.slane %v400, 1
    %vm402 = vcmp.lt.s32.totalorder %v400, %v401
    %v403 = vsel %vm402, %v400, %v401
    %v404 = vcombine.low %v392, %v403
    %v406 = vunpack.c.l.s4 1966171168
    %v407 = vunpack.c.0.s8 %v406
    %v408 = vlaneseq
    %v409 = vshrl.u32 %v408, 7
    %v410 = vsub.s32 %v407, %v409
    %v411 = vrot.slane %v404, %v410
    %v413 = vunpack.c.l.s4 1966171168
    %v414 = vunpack.c.0.s8 %v413
    %v415 = vlaneseq
    %v416 = vshrl.u32 %v415, 7
    %v417 = vsub.s32 %v414, %v416
    %v418 = vrot.slane %v411, %v417
    %v419 = vlaneseq
    %vm420 = vcmp.ge.s32.totalorder %v419, 0
    %vm421 = vcmp.lt.s32.totalorder %v419, 256
    %vm422 = vmand %vm420, %vm421
    %423 = vst.msk [vmem:[#allocation2] sm:$0x3] %vm422, %v418
    // Predicated region
    $region14: #{tpu_custom_call.1} parent=1 // pred_check
      _
    $region15: #{tpu_custom_call.1} parent=1 // pred_check_branch
      %425 = sbr.rel (0) target = $region17
    $region16: #{tpu_custom_call.1} parent=1 // pred_region
      %s427 = ssub.s32 32, 32
      %428 = vsyncadd [#allocation3], %s427
      %s430 = sshll.u32 [#allocation2], 4
      %s431 = int_to_ptr.vmem [resolvable:$true] %s430
      %433 = dma.vmem_to_hbm [thread:$0]  %s431, 32, %s3, [#allocation3]
    $region17: #{tpu_custom_call.1} parent=1 // pred_fallthru
      _
    // Predicated region
    $region18: #{tpu_custom_call.1} parent=1 // pred_check
      _
    $region19: #{tpu_custom_call.1} parent=1 // pred_check_branch
      %435 = sbr.rel (0) target = $region21
    $region20: #{tpu_custom_call.1} parent=1 // pred_region
      %436 = dma.done [#allocation3], 32
    $region21: #{tpu_custom_call.1} parent=1 // pred_fallthru
      _
    %437 = vsyncpa [#allocation3], 1

</llo_original>
